<compile_context>
chip_gen: v6e
topology: v6e:2x2x1
jax: 0.10.0
libtpu: 0.0.40
codegen_flags: <defaults>
</compile_context>

<pallas_src>
import functools

import jax
import jax.numpy as jnp
from jax.experimental import pallas as pl
from jax.experimental.pallas import tpu as pltpu


# ---------------------------------------------------------------------------
# Kernel: whole fused twin-head forward on one (TILE_B, ...) activation tile.
# ---------------------------------------------------------------------------
def _qnet_kernel(s_ref, a_ref,           # activations (f32 tiles)
                 ws_ref, wa_ref, b1_ref,  # fused layer 1 (state/action split)
                 w2_ref, b2_ref,          # fused block-diagonal layer 2
                 w3_ref, b3_ref,          # fused (2H, 2) output projection
                 out_ref):                # (TILE_B, 2): [:, 0]=q1, [:, 1]=q2
    s = s_ref[...].astype(jnp.bfloat16)
    a = a_ref[...].astype(jnp.bfloat16)

    # Layer 1 (both heads at once): (TILE_B, 2H)
    h = (jnp.dot(s, ws_ref[...], preferred_element_type=jnp.float32)
         + jnp.dot(a, wa_ref[...], preferred_element_type=jnp.float32)
         + b1_ref[...])
    h = jnp.maximum(h, 0.0)

    # Layer 2 (block-diagonal -> heads stay independent): (TILE_B, 2H)
    h = jnp.dot(h.astype(jnp.bfloat16), w2_ref[...],
                preferred_element_type=jnp.float32) + b2_ref[...]
    h = jnp.maximum(h, 0.0)

    # Output projection (block-structured): (TILE_B, 2)
    q = jnp.dot(h.astype(jnp.bfloat16), w3_ref[...],
                preferred_element_type=jnp.float32) + b3_ref[...]
    out_ref[...] = q.astype(out_ref.dtype)


# ---------------------------------------------------------------------------
# One-time parameter packing (off the per-forward hot path).
# ---------------------------------------------------------------------------
def prepare_params(params, num_inputs):
    """Pack the six nn.Linear layers into fused, pre-transposed bf16 weights."""
    W1, b1 = params["fc1"]; W2, b2 = params["fc2"]; W3, b3 = params["fc3"]
    W4, b4 = params["fc4"]; W5, b5 = params["fc5"]; W6, b6 = params["fc6"]
    H = W1.shape[0]
    f32 = jnp.float32

    # Layer 1: (D, 2H) = [W1.T | W4.T], split by rows into state/action parts.
    W14 = jnp.concatenate([W1.T, W4.T], axis=1).astype(f32)        # (D, 2H)
    Ws = W14[:num_inputs].astype(jnp.bfloat16)                     # (Ni, 2H)
    Wa = W14[num_inputs:].astype(jnp.bfloat16)                     # (Na, 2H)
    b14 = jnp.concatenate([b1, b4]).reshape(1, -1).astype(f32)     # (1, 2H)

    # Layer 2: block-diagonal (2H, 2H), off-blocks explicitly zero.
    Z = jnp.zeros((H, H), f32)
    top = jnp.concatenate([W2.T.astype(f32), Z], axis=1)
    bot = jnp.concatenate([Z, W5.T.astype(f32)], axis=1)
    W25 = jnp.concatenate([top, bot], axis=0).astype(jnp.bfloat16)  # (2H, 2H)
    b25 = jnp.concatenate([b2, b5]).reshape(1, -1).astype(f32)      # (1, 2H)

    # Output: (2H, 2), col 0 <- W3 on rows 0:H, col 1 <- W6 on rows H:2H.
    W36 = jnp.zeros((2 * H, 2), f32)
    W36 = W36.at[:H, 0].set(W3[0, :]).at[H:, 1].set(W6[0, :])
    W36 = W36.astype(jnp.bfloat16)                                  # (2H, 2)
    b36 = jnp.concatenate([b3, b6]).reshape(1, -1).astype(f32)      # (1, 2)

    return dict(Ws=Ws, Wa=Wa, b1=b14, W2=W25, b2=b25, W3=W36, b3=b36)


def _round_up(x, m):
    return ((x + m - 1) // m) * m


# ---------------------------------------------------------------------------
# Forward wrapper.
# ---------------------------------------------------------------------------
@functools.partial(jax.jit, static_argnames=("max_tile_b",))
def qnetwork_forward(state, action, packed, *, max_tile_b=512):
    """state: (B, num_inputs) f32, action: (B, num_actions) f32.

    Returns (q1, q2), each (B, 1) f32, matching QNetwork.forward.
    """
    B, num_inputs = state.shape
    num_actions = action.shape[1]
    state = state.astype(jnp.float32)
    action = action.astype(jnp.float32)

    # Batch tiling: multiple of 8 sublanes, bounded so VMEM stays small on all
    # generations (v5e/v6e 128 MiB, v7x 64 MiB physical / 32 MiB scoped).
    tile_b = min(max_tile_b, _round_up(B, 8))
    num_tiles = pl.cdiv(B, tile_b)
    Bp = num_tiles * tile_b
    if Bp != B:
        state = jnp.pad(state, ((0, Bp - B), (0, 0)))
        action = jnp.pad(action, ((0, Bp - B), (0, 0)))

    resident = lambda i: (0, 0)   # weights/biases stay VMEM-resident
    out = pl.pallas_call(
        _qnet_kernel,
        out_shape=jax.ShapeDtypeStruct((Bp, 2), jnp.float32),
        grid=(num_tiles,),
        in_specs=[
            pl.BlockSpec((tile_b, num_inputs), lambda i: (i, 0)),
            pl.BlockSpec((tile_b, num_actions), lambda i: (i, 0)),
            pl.BlockSpec(packed["Ws"].shape, resident),
            pl.BlockSpec(packed["Wa"].shape, resident),
            pl.BlockSpec(packed["b1"].shape, resident),
            pl.BlockSpec(packed["W2"].shape, resident),
            pl.BlockSpec(packed["b2"].shape, resident),
            pl.BlockSpec(packed["W3"].shape, resident),
            pl.BlockSpec(packed["b3"].shape, resident),
        ],
        out_specs=pl.BlockSpec((tile_b, 2), lambda i: (i, 0)),
        compiler_params=pltpu.CompilerParams(
            dimension_semantics=("parallel",)),
    )(state, action,
      packed["Ws"], packed["Wa"], packed["b1"],
      packed["W2"], packed["b2"],
      packed["W3"], packed["b3"])

    q1 = out[:B, 0:1]
    q2 = out[:B, 1:2]
    return q1, q2


# ---------------------------------------------------------------------------
# Init + pure-JAX reference (mirrors the PyTorch module exactly, f32).
# ---------------------------------------------------------------------------
def init_params(key, num_inputs, num_actions, hidden_dim):
    D = num_inputs + num_actions
    shapes = {
        "fc1": (hidden_dim, D),
        "fc2": (hidden_dim, hidden_dim),
        "fc3": (1, hidden_dim),
        "fc4": (hidden_dim, D),
        "fc5": (hidden_dim, hidden_dim),
        "fc6": (1, hidden_dim),
    }
    params = {}
    for name, (fan_out, fan_in) in shapes.items():
        key, kw, kb = jax.random.split(key, 3)
        limit = jnp.sqrt(6.0 / (fan_in + fan_out))
        W = jax.random.uniform(kw, (fan_out, fan_in), jnp.float32, -limit, limit)
        # Small non-zero biases so the packed-bias path is actually exercised.
        b = jax.random.uniform(kb, (fan_out,), jnp.float32, -0.1, 0.1)
        params[name] = (W, b)
    return params


def _reference_forward(state, action, params):
    sa = jnp.concatenate([state, action], axis=1)

    def lin(x, name):
        W, b = params[name]
        return x @ W.T + b

    x1 = jax.nn.relu(lin(sa, "fc1"))
    x1 = jax.nn.relu(lin(x1, "fc2"))
    x1 = lin(x1, "fc3")
    x2 = jax.nn.relu(lin(sa, "fc4"))
    x2 = jax.nn.relu(lin(x2, "fc5"))
    x2 = lin(x2, "fc6")
    return x1, x2


if __name__ == "__main__":
    num_inputs, num_actions, hidden_dim = 16, 4, 32
    batch = 8

    key = jax.random.PRNGKey(0)
    kp, ks, ka = jax.random.split(key, 3)

    params = init_params(kp, num_inputs, num_actions, hidden_dim)
    packed = prepare_params(params, num_inputs)   # one-time packing

    state = jax.random.normal(ks, (batch, num_inputs), jnp.float32)
    action = jax.random.normal(ka, (batch, num_actions), jnp.float32)

    q1, q2 = qnetwork_forward(state, action, packed)
    jax.block_until_ready((q1, q2))

    r1, r2 = _reference_forward(state, action, params)
    assert q1.shape == (batch, 1) and q2.shape == (batch, 1)
    # bf16 MXU operands with f32 accumulation -> loosened tolerances vs f32 ref.
    assert jnp.allclose(q1, r1, atol=5e-2, rtol=5e-2), float(jnp.max(jnp.abs(q1 - r1)))
    assert jnp.allclose(q2, r2, atol=5e-2, rtol=5e-2), float(jnp.max(jnp.abs(q2 - r2)))

    # Also exercise the batch grid + padding path (grid > 1, B not multiple of 8).
    batch2 = 40
    ks2, ka2 = jax.random.split(jax.random.PRNGKey(1))
    state2 = jax.random.normal(ks2, (batch2, num_inputs), jnp.float32)
    action2 = jax.random.normal(ka2, (batch2, num_actions), jnp.float32)
    g1, g2 = qnetwork_forward(state2, action2, packed, max_tile_b=16)
    jax.block_until_ready((g1, g2))
    t1, t2 = _reference_forward(state2, action2, params)
    assert g1.shape == (batch2, 1) and g2.shape == (batch2, 1)
    assert jnp.allclose(g1, t1, atol=5e-2, rtol=5e-2), float(jnp.max(jnp.abs(g1 - t1)))
    assert jnp.allclose(g2, t2, atol=5e-2, rtol=5e-2), float(jnp.max(jnp.abs(g2 - t2)))

    print("KERNEL_OK")
</pallas_src>

<mosaic_0001>
module attributes {stable_mosaic.version = 11 : i64} {
  func.func @_qnet_kernel(%arg0: i32, %arg1: memref<8x16xf32, #tpu.memory_space<vmem>>, %arg2: memref<8x4xf32, #tpu.memory_space<vmem>>, %arg3: memref<16x64xbf16, #tpu.memory_space<vmem>>, %arg4: memref<4x64xbf16, #tpu.memory_space<vmem>>, %arg5: memref<1x64xf32, #tpu.memory_space<vmem>>, %arg6: memref<64x64xbf16, #tpu.memory_space<vmem>>, %arg7: memref<1x64xf32, #tpu.memory_space<vmem>>, %arg8: memref<64x2xbf16, #tpu.memory_space<vmem>>, %arg9: memref<1x2xf32, #tpu.memory_space<vmem>>, %arg10: memref<8x2xf32, #tpu.memory_space<vmem>>) attributes {dimension_semantics = [#tpu.dimension_semantics<parallel>], iteration_bounds = array<i64: 1>, scalar_prefetch = 0 : i64, scratch_operands = 0 : i64, tpu.core_type = #tpu.core_type<tc>, window_params = [{transform_indices = @transform_0, window_bounds = array<i64: 8, 16>}, {transform_indices = @transform_1, window_bounds = array<i64: 8, 4>}, {pipeline_mode = #tpu.pipeline_mode<synchronous>, transform_indices = @transform_2, window_bounds = array<i64: 16, 64>}, {pipeline_mode = #tpu.pipeline_mode<synchronous>, transform_indices = @transform_3, window_bounds = array<i64: 4, 64>}, {pipeline_mode = #tpu.pipeline_mode<synchronous>, transform_indices = @transform_4, window_bounds = array<i64: 1, 64>}, {pipeline_mode = #tpu.pipeline_mode<synchronous>, transform_indices = @transform_5, window_bounds = array<i64: 64, 64>}, {pipeline_mode = #tpu.pipeline_mode<synchronous>, transform_indices = @transform_6, window_bounds = array<i64: 1, 64>}, {pipeline_mode = #tpu.pipeline_mode<synchronous>, transform_indices = @transform_7, window_bounds = array<i64: 64, 2>}, {pipeline_mode = #tpu.pipeline_mode<synchronous>, transform_indices = @transform_8, window_bounds = array<i64: 1, 2>}, {transform_indices = @transform_9, window_bounds = array<i64: 8, 2>}]} {
    %c0 = arith.constant 0 : index
    %c0_0 = arith.constant 0 : index
    %0 = vector.load %arg1[%c0, %c0_0] : memref<8x16xf32, #tpu.memory_space<vmem>>, vector<8x16xf32>
    %1 = arith.truncf %0 : vector<8x16xf32> to vector<8x16xbf16>
    %c0_1 = arith.constant 0 : index
    %c0_2 = arith.constant 0 : index
    %2 = vector.load %arg2[%c0_1, %c0_2] : memref<8x4xf32, #tpu.memory_space<vmem>>, vector<8x4xf32>
    %3 = arith.truncf %2 : vector<8x4xf32> to vector<8x4xbf16>
    %c0_3 = arith.constant 0 : index
    %c0_4 = arith.constant 0 : index
    %4 = vector.load %arg3[%c0_3, %c0_4] : memref<16x64xbf16, #tpu.memory_space<vmem>>, vector<16x64xbf16>
    %cst = arith.constant dense<0.000000e+00> : vector<8x64xf32>
    %5 = tpu.matmul %1, %4, %cst {dimension_numbers = #tpu.dot_dimension_numbers<[1], [0], [0], [1], [0, 0, 1, 1], [], []>} : vector<8x16xbf16>, vector<16x64xbf16>, vector<8x64xf32> -> vector<8x64xf32>
    %c0_5 = arith.constant 0 : index
    %c0_6 = arith.constant 0 : index
    %6 = vector.load %arg4[%c0_5, %c0_6] : memref<4x64xbf16, #tpu.memory_space<vmem>>, vector<4x64xbf16>
    %cst_7 = arith.constant dense<0.000000e+00> : vector<8x64xf32>
    %7 = tpu.matmul %3, %6, %cst_7 {dimension_numbers = #tpu.dot_dimension_numbers<[1], [0], [0], [1], [0, 0, 1, 1], [], []>} : vector<8x4xbf16>, vector<4x64xbf16>, vector<8x64xf32> -> vector<8x64xf32>
    %8 = arith.addf %5, %7 : vector<8x64xf32>
    %c0_8 = arith.constant 0 : index
    %c0_9 = arith.constant 0 : index
    %9 = vector.load %arg5[%c0_8, %c0_9] : memref<1x64xf32, #tpu.memory_space<vmem>>, vector<1x64xf32>
    %10 = vector.broadcast %9 : vector<1x64xf32> to vector<8x64xf32>
    %11 = arith.addf %8, %10 : vector<8x64xf32>
    %cst_10 = arith.constant 0.000000e+00 : f32
    %12 = vector.broadcast %cst_10 : f32 to vector<8x64xf32>
    %13 = arith.maximumf %11, %12 : vector<8x64xf32>
    %14 = arith.truncf %13 : vector<8x64xf32> to vector<8x64xbf16>
    %c0_11 = arith.constant 0 : index
    %c0_12 = arith.constant 0 : index
    %15 = vector.load %arg6[%c0_11, %c0_12] : memref<64x64xbf16, #tpu.memory_space<vmem>>, vector<64x64xbf16>
    %cst_13 = arith.constant dense<0.000000e+00> : vector<8x64xf32>
    %16 = tpu.matmul %14, %15, %cst_13 {dimension_numbers = #tpu.dot_dimension_numbers<[1], [0], [0], [1], [0, 0, 1, 1], [], []>} : vector<8x64xbf16>, vector<64x64xbf16>, vector<8x64xf32> -> vector<8x64xf32>
    %c0_14 = arith.constant 0 : index
    %c0_15 = arith.constant 0 : index
    %17 = vector.load %arg7[%c0_14, %c0_15] : memref<1x64xf32, #tpu.memory_space<vmem>>, vector<1x64xf32>
    %18 = vector.broadcast %17 : vector<1x64xf32> to vector<8x64xf32>
    %19 = arith.addf %16, %18 : vector<8x64xf32>
    %cst_16 = arith.constant 0.000000e+00 : f32
    %20 = vector.broadcast %cst_16 : f32 to vector<8x64xf32>
    %21 = arith.maximumf %19, %20 : vector<8x64xf32>
    %22 = arith.truncf %21 : vector<8x64xf32> to vector<8x64xbf16>
    %c0_17 = arith.constant 0 : index
    %c0_18 = arith.constant 0 : index
    %23 = vector.load %arg8[%c0_17, %c0_18] : memref<64x2xbf16, #tpu.memory_space<vmem>>, vector<64x2xbf16>
    %cst_19 = arith.constant dense<0.000000e+00> : vector<8x2xf32>
    %24 = tpu.matmul %22, %23, %cst_19 {dimension_numbers = #tpu.dot_dimension_numbers<[1], [0], [0], [1], [0, 0, 1, 1], [], []>} : vector<8x64xbf16>, vector<64x2xbf16>, vector<8x2xf32> -> vector<8x2xf32>
    %c0_20 = arith.constant 0 : index
    %c0_21 = arith.constant 0 : index
    %25 = vector.load %arg9[%c0_20, %c0_21] : memref<1x2xf32, #tpu.memory_space<vmem>>, vector<1x2xf32>
    %26 = vector.broadcast %25 : vector<1x2xf32> to vector<8x2xf32>
    %27 = arith.addf %24, %26 : vector<8x2xf32>
    %c0_22 = arith.constant 0 : index
    %c0_23 = arith.constant 0 : index
    %28 = vector.load %arg10[%c0_22, %c0_23] : memref<8x2xf32, #tpu.memory_space<vmem>>, vector<8x2xf32>
    tpu.vector_store %arg10[%c0_22, %c0_23], %27 {strides = array<i32>} : memref<8x2xf32, #tpu.memory_space<vmem>>, vector<8x2xf32>,
    return
  }
  func.func @transform_0(%arg0: i32) -> (i32, i32) {
    %c0_i32 = arith.constant 0 : i32
    %c0_i32_0 = arith.constant 0 : i32
    return %arg0, %c0_i32 : i32, i32
  }
  func.func @transform_1(%arg0: i32) -> (i32, i32) {
    %c0_i32 = arith.constant 0 : i32
    %c0_i32_0 = arith.constant 0 : i32
    return %arg0, %c0_i32 : i32, i32
  }
  func.func @transform_2(%arg0: i32) -> (i32, i32) {
    %c0_i32 = arith.constant 0 : i32
    %c0_i32_0 = arith.constant 0 : i32
    %c0_i32_1 = arith.constant 0 : i32
    return %c0_i32, %c0_i32_0 : i32, i32
  }
  func.func @transform_3(%arg0: i32) -> (i32, i32) {
    %c0_i32 = arith.constant 0 : i32
    %c0_i32_0 = arith.constant 0 : i32
    %c0_i32_1 = arith.constant 0 : i32
    return %c0_i32, %c0_i32_0 : i32, i32
  }
  func.func @transform_4(%arg0: i32) -> (i32, i32) {
    %c0_i32 = arith.constant 0 : i32
    %c0_i32_0 = arith.constant 0 : i32
    %c0_i32_1 = arith.constant 0 : i32
    return %c0_i32, %c0_i32_0 : i32, i32
  }
  func.func @transform_5(%arg0: i32) -> (i32, i32) {
    %c0_i32 = arith.constant 0 : i32
    %c0_i32_0 = arith.constant 0 : i32
    %c0_i32_1 = arith.constant 0 : i32
    return %c0_i32, %c0_i32_0 : i32, i32
  }
  func.func @transform_6(%arg0: i32) -> (i32, i32) {
    %c0_i32 = arith.constant 0 : i32
    %c0_i32_0 = arith.constant 0 : i32
    %c0_i32_1 = arith.constant 0 : i32
    return %c0_i32, %c0_i32_0 : i32, i32
  }
  func.func @transform_7(%arg0: i32) -> (i32, i32) {
    %c0_i32 = arith.constant 0 : i32
    %c0_i32_0 = arith.constant 0 : i32
    %c0_i32_1 = arith.constant 0 : i32
    return %c0_i32, %c0_i32_0 : i32, i32
  }
  func.func @transform_8(%arg0: i32) -> (i32, i32) {
    %c0_i32 = arith.constant 0 : i32
    %c0_i32_0 = arith.constant 0 : i32
    %c0_i32_1 = arith.constant 0 : i32
    return %c0_i32, %c0_i32_0 : i32, i32
  }
  func.func @transform_9(%arg0: i32) -> (i32, i32) {
    %c0_i32 = arith.constant 0 : i32
    %c0_i32_0 = arith.constant 0 : i32
    return %arg0, %c0_i32 : i32, i32
  }
}

</mosaic_0001>

<llo_original>
// kernel: qnetwork_forward.1
$region0: #{qnetwork_forward.1}
  #allocation0 [shape = 'u32[]', space=smem, size = 0x4, offset = 0x4, fixed_abs, tag = 'smem constant byte address 0x4 - core index']
  #allocation1 [shape = 'u32[144,128]{1,0:T(1,128)}', space=vmem, size = 0x12000, scoped, tag = 'internal scratch']
  %s0 = inlined_call_operand.vmem [shape: f32[8,16], index: 0, kind: input, shape index: {}]
  %s1 = inlined_call_operand.vmem [shape: f32[8,4], index: 1, kind: input, shape index: {}]
  %s2 = inlined_call_operand.vmem [shape: bf16[16,64], index: 2, kind: input, shape index: {}]
  %s3 = inlined_call_operand.vmem [shape: bf16[4,64], index: 3, kind: input, shape index: {}]
  %s4 = inlined_call_operand.vmem [shape: f32[1,64], index: 4, kind: input, shape index: {}]
  %s5 = inlined_call_operand.vmem [shape: bf16[64,64], index: 5, kind: input, shape index: {}]
  %s6 = inlined_call_operand.vmem [shape: f32[1,64], index: 6, kind: input, shape index: {}]
  %s7 = inlined_call_operand.vmem [shape: bf16[64,2], index: 7, kind: input, shape index: {}]
  %s8 = inlined_call_operand.vmem [shape: f32[1,2], index: 8, kind: input, shape index: {}]
  %s9 = inlined_call_operand.vmem [shape: f32[8,2], index: 9, kind: output, shape index: {}]
  %s10 = sld [smem:[#allocation0]]
  $region46: #{qnetwork_forward.1} parent=0
    _
  %s12 = ssub.s32 1, %s10
  %s13 = scalar_select 0, %s12, %s10
  // Predicated region
  $region2: #{qnetwork_forward.1} parent=0 // pred_check
    _
  $region3: #{qnetwork_forward.1} parent=0 // pred_check_branch
    %15 = sbr.rel (0) target = $region5
  $region4: #{qnetwork_forward.1} parent=0 // pred_region
    _
  $region5: #{qnetwork_forward.1} parent=0 // pred_fallthru
    _
  // Predicated region
  $region6: #{qnetwork_forward.1} parent=0 // pred_check
    _
  $region7: #{qnetwork_forward.1} parent=0 // pred_check_branch
    %17 = sbr.rel (0) target = $region9
  $region8: #{qnetwork_forward.1} parent=0 // pred_region
    _
  $region9: #{qnetwork_forward.1} parent=0 // pred_fallthru
    _
  // Predicated region
  $region10: #{qnetwork_forward.1} parent=0 // pred_check
    _
  $region11: #{qnetwork_forward.1} parent=0 // pred_check_branch
    %19 = sbr.rel (0) target = $region13
  $region12: #{qnetwork_forward.1} parent=0 // pred_region
    _
  $region13: #{qnetwork_forward.1} parent=0 // pred_fallthru
    _
  // Predicated region
  $region14: #{qnetwork_forward.1} parent=0 // pred_check
    _
  $region15: #{qnetwork_forward.1} parent=0 // pred_check_branch
    %21 = sbr.rel (0) target = $region17
  $region16: #{qnetwork_forward.1} parent=0 // pred_region
    _
  $region17: #{qnetwork_forward.1} parent=0 // pred_fallthru
    _
  // Predicated region
  $region18: #{qnetwork_forward.1} parent=0 // pred_check
    _
  $region19: #{qnetwork_forward.1} parent=0 // pred_check_branch
    %23 = sbr.rel (0) target = $region21
  $region20: #{qnetwork_forward.1} parent=0 // pred_region
    _
  $region21: #{qnetwork_forward.1} parent=0 // pred_fallthru
    _
  // Predicated region
  $region22: #{qnetwork_forward.1} parent=0 // pred_check
    _
  $region23: #{qnetwork_forward.1} parent=0 // pred_check_branch
    %25 = sbr.rel (0) target = $region25
  $region24: #{qnetwork_forward.1} parent=0 // pred_region
    _
  $region25: #{qnetwork_forward.1} parent=0 // pred_fallthru
    _
  // Predicated region
  $region26: #{qnetwork_forward.1} parent=0 // pred_check
    _
  $region27: #{qnetwork_forward.1} parent=0 // pred_check_branch
    %27 = sbr.rel (0) target = $region29
  $region28: #{qnetwork_forward.1} parent=0 // pred_region
    _
  $region29: #{qnetwork_forward.1} parent=0 // pred_fallthru
    _
  // Predicated region
  $region30: #{qnetwork_forward.1} parent=0 // pred_check
    _
  $region31: #{qnetwork_forward.1} parent=0 // pred_check_branch
    %29 = sbr.rel (0) target = $region33
  $region32: #{qnetwork_forward.1} parent=0 // pred_region
    _
  $region33: #{qnetwork_forward.1} parent=0 // pred_fallthru
    _
  // Predicated region
  $region34: #{qnetwork_forward.1} parent=0 // pred_check
    _
  $region35: #{qnetwork_forward.1} parent=0 // pred_check_branch
    %31 = sbr.rel (0) target = $region37
  $region36: #{qnetwork_forward.1} parent=0 // pred_region
    _
  $region37: #{qnetwork_forward.1} parent=0 // pred_fallthru
    _
  %v33 = vld [vmem:[%s0] sm:$0xff]
  %v34 = vpack.c.bf16 %v33, %v33
  %v35 = vld [vmem:[%s1] sm:$0xff]
  %v36 = vpack.c.bf16 %v35, %v35
  %v37 = vld [vmem:[%s2] sm:$0xf]
  %v38 = vld [vmem:[%s2 + $0x4] sm:$0xf]
  %v39 = vld [vmem:[%s3] sm:$0x3]
  %vm40 = vcmask 31744
  %v42 = vsel %vm40, %v36, 0
  %vm44 = vcmask 1041408
  %v46 = vsel %vm44, %v39, 0
  %48 = vmatprep.subr.bf16.mxu0 0
  %49 = vmatpush1.bf16.msra.mxu0 0
  %50 = vmatprep.subr.bf16.mxu0 0
  %51 = vmatpush1.bf16.msra.mxu0 0
  %52 = vmatprep.subr.bf16.mxu0 0
  %53 = vmatpush1.bf16.msra.mxu0 0
  %54 = vmatprep.subr.bf16.mxu0 0
  %55 = vmatpush1.bf16.msra.mxu0 0
  %56 = vmatprep.subr.bf16.mxu0 0
  %57 = vmatpush1.bf16.msra.mxu0 0
  %58 = vmatprep.subr.bf16.mxu0 0
  %59 = vmatpush1.bf16.msra.mxu0 0
  %60 = vmatprep.subr.bf16.mxu0 0
  %61 = vmatpush1.bf16.msra.mxu0 0
  %62 = vmatprep.subr.bf16.mxu0 0
  %63 = vmatpush1.bf16.msra.mxu0 %v46
  %64 = vmatprep.subr.bf16.mxu0 0
  %65 = vmatpush2.bf16.msra.mxu0 0
  %66 = vmatprep.subr.bf16.mxu0 0
  %67 = vmatpush2.bf16.msra.mxu0 0
  %68 = vmatprep.subr.bf16.mxu0 0
  %69 = vmatpush2.bf16.msra.mxu0 0
  %70 = vmatprep.subr.bf16.mxu0 0
  %71 = vmatpush2.bf16.msra.mxu0 0
  %72 = vmatprep.subr.bf16.mxu0 0
  %73 = vmatpush2.bf16.msra.mxu0 0
  %74 = vmatprep.subr.bf16.mxu0 0
  %75 = vmatpush2.bf16.msra.mxu0 0
  %76 = vmatprep.subr.bf16.mxu0 0
  %77 = vmatpush2.bf16.msra.mxu0 0
  %78 = vmatprep.subr.bf16.mxu0 0
  %79 = vmatpush2.bf16.msra.mxu0 0
  %80 = vmatprep.mubr.bf16.mxu0 0
  %81 = vmatmul.mubr.bf16.gmra.mxu0 %v42
  %v82 = vpop.f32.mrf.mxu0
  %v83 = vadd.f32 0.0, %v82
  %v84 = vpop.f32.mrf.mxu0
  %v85 = vpop.f32.mrf.mxu0
  %v86 = vpop.f32.mrf.mxu0
  %87 = vdwg.mxu0
  %v90 = vunpack.c.l.b16 %v37
  %v91 = vunpack.c.l.b16 %v38
  %v92 = vpack.c.b16 %v91, %v90
  %vm94 = vcmask 130048
  %v96 = vsel %vm94, %v34, 0
  %98 = vmatprep.subr.bf16.mxu0 0
  %99 = vmatpush1.bf16.msra.mxu0 0
  %100 = vmatprep.subr.bf16.mxu0 0
  %101 = vmatpush1.bf16.msra.mxu0 0
  %102 = vmatprep.subr.bf16.mxu0 0
  %103 = vmatpush1.bf16.msra.mxu0 0
  %104 = vmatprep.subr.bf16.mxu0 0
  %105 = vmatpush1.bf16.msra.mxu0 0
  %106 = vmatprep.subr.bf16.mxu0 0
  %107 = vmatpush1.bf16.msra.mxu0 0
  %108 = vmatprep.subr.bf16.mxu0 0
  %109 = vmatpush1.bf16.msra.mxu0 0
  %110 = vmatprep.subr.bf16.mxu0 0
  %111 = vmatpush1.bf16.msra.mxu0 0
  %112 = vmatprep.subr.bf16.mxu0 0
  %113 = vmatpush1.bf16.msra.mxu0 %v92
  %114 = vmatprep.subr.bf16.mxu0 0
  %115 = vmatpush2.bf16.msra.mxu0 0
  %116 = vmatprep.subr.bf16.mxu0 0
  %117 = vmatpush2.bf16.msra.mxu0 0
  %118 = vmatprep.subr.bf16.mxu0 0
  %119 = vmatpush2.bf16.msra.mxu0 0
  %120 = vmatprep.subr.bf16.mxu0 0
  %121 = vmatpush2.bf16.msra.mxu0 0
  %122 = vmatprep.subr.bf16.mxu0 0
  %123 = vmatpush2.bf16.msra.mxu0 0
  %124 = vmatprep.subr.bf16.mxu0 0
  %125 = vmatpush2.bf16.msra.mxu0 0
  %126 = vmatprep.subr.bf16.mxu0 0
  %127 = vmatpush2.bf16.msra.mxu0 0
  %128 = vmatprep.subr.bf16.mxu0 0
  %129 = vmatpush2.bf16.msra.mxu0 0
  %130 = vmatprep.mubr.bf16.mxu0 0
  %131 = vmatmul.mubr.bf16.gmra.mxu0 %v96
  %v132 = vpop.f32.mrf.mxu0
  %v133 = vadd.f32 %v83, %v132
  %v134 = vpop.f32.mrf.mxu0
  %v135 = vpop.f32.mrf.mxu0
  %v136 = vpop.f32.mrf.mxu0
  %137 = vdwg.mxu0
  %v138 = vld [vmem:[%s4] sm:$0x1]
  %v140 = vlaneseq
  %v141 = vshrl.u32 %v140, 7
  %v142 = vsub.s32 0, %v141
  %v143 = vrot.slane %v138, %v142
  %v145 = vadd.f32 %v133, %v143
  %v146 = vmax.f32 %v145, 0.0
  %v147 = vpack.c.bf16 %v146, %v146
  %v148 = vld [vmem:[%s5] sm:$0xf]
  %v149 = vld [vmem:[%s5 + $0x4] sm:$0xf]
  %v150 = vld [vmem:[%s5 + $0x8] sm:$0xf]
  %v151 = vld [vmem:[%s5 + $0xc] sm:$0xf]
  %v152 = vld [vmem:[%s5 + $0x10] sm:$0xf]
  %v153 = vld [vmem:[%s5 + $0x14] sm:$0xf]
  %v154 = vld [vmem:[%s5 + $0x18] sm:$0xf]
  %v155 = vld [vmem:[%s5 + $0x1c] sm:$0xf]
  %v156 = vld [vmem:[%s6] sm:$0x1]
  %v158 = vlaneseq
  %v159 = vshrl.u32 %v158, 7
  %v160 = vsub.s32 0, %v159
  %v161 = vrot.slane %v156, %v160
  %v171 = vunpack.c.l.b16 %v148
  %v172 = vunpack.c.l.b16 %v149
  %v173 = vunpack.c.l.b16 %v150
  %v174 = vunpack.c.l.b16 %v151
  %v175 = vunpack.c.l.b16 %v152
  %v176 = vunpack.c.l.b16 %v153
  %v177 = vunpack.c.l.b16 %v154
  %v178 = vunpack.c.l.b16 %v155
  %v179 = vpack.c.b16 %v172, %v171
  %v180 = vpack.c.b16 %v174, %v173
  %v181 = vpack.c.b16 %v176, %v175
  %v182 = vpack.c.b16 %v178, %v177
  %vm187 = vcmask 523264
  %v189 = vsel %vm187, %v147, 0
  %191 = vmatprep.subr.bf16.mxu0 0
  %192 = vmatpush1.bf16.msra.mxu0 0
  %193 = vmatprep.subr.bf16.mxu0 0
  %194 = vmatpush1.bf16.msra.mxu0 0
  %195 = vmatprep.subr.bf16.mxu0 0
  %196 = vmatpush1.bf16.msra.mxu0 0
  %197 = vmatprep.subr.bf16.mxu0 0
  %198 = vmatpush1.bf16.msra.mxu0 0
  %199 = vmatprep.subr.bf16.mxu0 0
  %200 = vmatpush1.bf16.msra.mxu0 %v182
  %201 = vmatprep.subr.bf16.mxu0 0
  %202 = vmatpush1.bf16.msra.mxu0 %v181
  %203 = vmatprep.subr.bf16.mxu0 0
  %204 = vmatpush1.bf16.msra.mxu0 %v180
  %205 = vmatprep.subr.bf16.mxu0 0
  %206 = vmatpush1.bf16.msra.mxu0 %v179
  %207 = vmatprep.subr.bf16.mxu0 0
  %208 = vmatpush2.bf16.msra.mxu0 0
  %209 = vmatprep.subr.bf16.mxu0 0
  %210 = vmatpush2.bf16.msra.mxu0 0
  %211 = vmatprep.subr.bf16.mxu0 0
  %212 = vmatpush2.bf16.msra.mxu0 0
  %213 = vmatprep.subr.bf16.mxu0 0
  %214 = vmatpush2.bf16.msra.mxu0 0
  %215 = vmatprep.subr.bf16.mxu0 0
  %216 = vmatpush2.bf16.msra.mxu0 0
  %217 = vmatprep.subr.bf16.mxu0 0
  %218 = vmatpush2.bf16.msra.mxu0 0
  %219 = vmatprep.subr.bf16.mxu0 0
  %220 = vmatpush2.bf16.msra.mxu0 0
  %221 = vmatprep.subr.bf16.mxu0 0
  %222 = vmatpush2.bf16.msra.mxu0 0
  %223 = vmatprep.mubr.bf16.mxu0 0
  %224 = vmatmul.mubr.bf16.gmra.mxu0 %v189
  %v225 = vpop.f32.mrf.mxu0
  %v226 = vadd.f32 %v161, %v225
  %v227 = vpop.f32.mrf.mxu0
  %v228 = vpop.f32.mrf.mxu0
  %v229 = vpop.f32.mrf.mxu0
  %230 = vdwg.mxu0
  %v231 = vmax.f32 %v226, 0.0
  %v232 = vpack.c.bf16 %v231, %v231
  %v233 = vld [vmem:[%s7] sm:$0xf]
  %v234 = vld [vmem:[%s7 + $0x4] sm:$0xf]
  %v235 = vld [vmem:[%s7 + $0x8] sm:$0xf]
  %v236 = vld [vmem:[%s7 + $0xc] sm:$0xf]
  %v237 = vld [vmem:[%s7 + $0x10] sm:$0xf]
  %v238 = vld [vmem:[%s7 + $0x14] sm:$0xf]
  %v239 = vld [vmem:[%s7 + $0x18] sm:$0xf]
  %v240 = vld [vmem:[%s7 + $0x1c] sm:$0xf]
  %v241 = vld [vmem:[%s8] sm:$0x1]
  %v243 = vlaneseq
  %v244 = vshrl.u32 %v243, 7
  %v245 = vsub.s32 0, %v244
  %v246 = vrot.slane %v241, %v245
  %v256 = vunpack.c.l.b16 %v233
  %v257 = vunpack.c.l.b16 %v234
  %v258 = vunpack.c.l.b16 %v235
  %v259 = vunpack.c.l.b16 %v236
  %v260 = vunpack.c.l.b16 %v237
  %v261 = vunpack.c.l.b16 %v238
  %v262 = vunpack.c.l.b16 %v239
  %v263 = vunpack.c.l.b16 %v240
  %v264 = vpack.c.b16 %v257, %v256
  %v265 = vpack.c.b16 %v259, %v258
  %v266 = vpack.c.b16 %v261, %v260
  %v267 = vpack.c.b16 %v263, %v262
  %v273 = vsel %vm187, %v232, 0
  %275 = vmatprep.subr.bf16.mxu0 0
  %276 = vmatpush1.bf16.msra.mxu0 0
  %277 = vmatprep.subr.bf16.mxu0 0
  %278 = vmatpush1.bf16.msra.mxu0 0
  %279 = vmatprep.subr.bf16.mxu0 0
  %280 = vmatpush1.bf16.msra.mxu0 0
  %281 = vmatprep.subr.bf16.mxu0 0
  %282 = vmatpush1.bf16.msra.mxu0 0
  %283 = vmatprep.subr.bf16.mxu0 0
  %284 = vmatpush1.bf16.msra.mxu0 %v267
  %285 = vmatprep.subr.bf16.mxu0 0
  %286 = vmatpush1.bf16.msra.mxu0 %v266
  %287 = vmatprep.subr.bf16.mxu0 0
  %288 = vmatpush1.bf16.msra.mxu0 %v265
  %289 = vmatprep.subr.bf16.mxu0 0
  %290 = vmatpush1.bf16.msra.mxu0 %v264
  %291 = vmatprep.subr.bf16.mxu0 0
  %292 = vmatpush2.bf16.msra.mxu0 0
  %293 = vmatprep.subr.bf16.mxu0 0
  %294 = vmatpush2.bf16.msra.mxu0 0
  %295 = vmatprep.subr.bf16.mxu0 0
  %296 = vmatpush2.bf16.msra.mxu0 0
  %297 = vmatprep.subr.bf16.mxu0 0
  %298 = vmatpush2.bf16.msra.mxu0 0
  %299 = vmatprep.subr.bf16.mxu0 0
  %300 = vmatpush2.bf16.msra.mxu0 0
  %301 = vmatprep.subr.bf16.mxu0 0
  %302 = vmatpush2.bf16.msra.mxu0 0
  %303 = vmatprep.subr.bf16.mxu0 0
  %304 = vmatpush2.bf16.msra.mxu0 0
  %305 = vmatprep.subr.bf16.mxu0 0
  %306 = vmatpush2.bf16.msra.mxu0 0
  %307 = vmatprep.mubr.bf16.mxu0 0
  %308 = vmatmul.mubr.bf16.gmra.mxu0 %v273
  %v309 = vpop.f32.mrf.mxu0
  %v310 = vadd.f32 %v246, %v309
  %v311 = vpop.f32.mrf.mxu0
  %v312 = vpop.f32.mrf.mxu0
  %v313 = vpop.f32.mrf.mxu0
  %314 = vdwg.mxu0
  %vm315 = vcmask 15360
  %316 = vst.msk [vmem:[%s9] sm:$0xff] %vm315, %v310
  // Predicated region
  $region38: #{qnetwork_forward.1} parent=0 // pred_check
    _
  $region39: #{qnetwork_forward.1} parent=0 // pred_check_branch
    %318 = sbr.rel (0) target = $region41
  $region40: #{qnetwork_forward.1} parent=0 // pred_region
    _
  $region41: #{qnetwork_forward.1} parent=0 // pred_fallthru
    _
  // Predicated region
  $region42: #{qnetwork_forward.1} parent=0 // pred_check
    _
  $region43: #{qnetwork_forward.1} parent=0 // pred_check_branch
    %320 = sbr.rel (0) target = $region45
  $region44: #{qnetwork_forward.1} parent=0 // pred_region
    _
  $region45: #{qnetwork_forward.1} parent=0 // pred_fallthru
    _

</llo_original>
